<compile_context>
chip_gen: v6e
topology: v6e:2x2x1
jax: 0.10.0
libtpu: 0.0.40
codegen_flags: <defaults>
</compile_context>

<pallas_src>
import math

import jax
import jax.numpy as jnp
from jax.experimental import pallas as pl
from jax.experimental.pallas import tpu as pltpu


def actor_mlp_kernel(x_ref, w0_ref, b0_ref, w1_ref, b1_ref, w2_ref, b2_ref, o_ref):
    """One batch-tile of the MLP forward.

    x_ref : (TILE_B, D_in)   f32  (cast to bf16 on the VPU for the MXU)
    w0    : (D_in, F0) bf16  b0: (1, F0)    f32
    w1    : (F0, F1)   bf16  b1: (1, F1)    f32
    w2    : (F1, D_out) bf16 b2: (1, D_out) f32
    o_ref : (TILE_B, D_out)  f32  (narrow output; partial batch tile is masked by Pallas)
    """
    x = x_ref[...].astype(jnp.bfloat16)
    h0 = jnp.dot(x, w0_ref[...], preferred_element_type=jnp.float32) + b0_ref[...]
    h0 = jnp.maximum(h0, 0.0)  # f32 elementwise (VPU)
    h1 = (
        jnp.dot(h0.astype(jnp.bfloat16), w1_ref[...], preferred_element_type=jnp.float32)
        + b1_ref[...]
    )
    h1 = jnp.maximum(h1, 0.0)
    o_ref[...] = (
        jnp.dot(h1.astype(jnp.bfloat16), w2_ref[...], preferred_element_type=jnp.float32)
        + b2_ref[...]
    )


def _round_up(x, m):
    return ((x + m - 1) // m) * m


def _select_tile_b(B, max_tile=1024, min_steps=4):
    """Tile the batch so large B gets >= min_steps grid steps (dual-TC v7x), capped at
    max_tile rows (keeps per-step overhead low on single-TC v5e/v6e); small B gets one
    tile rounded to a sublane multiple (8 for f32 x)."""
    tile = min(max_tile, _round_up(pl.cdiv(B, min_steps), 8))
    return max(tile, 8)


def actor_forward(x, params, max_tile_b=1024):
    """JAX wrapper. x: (B, 1, D_in) or (B, D_in). Returns (B, D_out) float32."""
    # Glue: torch.squeeze(x, 1).float()
    if x.ndim == 3 and x.shape[1] == 1:
        x = jnp.squeeze(x, axis=1)
    x = x.astype(jnp.float32)

    w0, b0, w1, b1, w2, b2 = params
    B, d_in = x.shape
    f0 = w0.shape[1]
    f1 = w1.shape[1]
    d_out = w2.shape[1]

    tile_b = _select_tile_b(B, max_tile=max_tile_b)
    grid = (pl.cdiv(B, tile_b),)

    # Tiny one-time casts (weights/biases only; x stays f32 and is cast in-kernel).
    w0_b = w0.astype(jnp.bfloat16)
    w1_b = w1.astype(jnp.bfloat16)
    w2_b = w2.astype(jnp.bfloat16)
    b0_f = b0.astype(jnp.float32)
    b1_f = b1.astype(jnp.float32)
    b2_f = b2.astype(jnp.float32)

    return pl.pallas_call(
        actor_mlp_kernel,
        out_shape=jax.ShapeDtypeStruct((B, d_out), jnp.float32),
        grid=grid,
        in_specs=[
            pl.BlockSpec((tile_b, d_in), lambda i: (i, 0)),   # x: streamed per batch tile
            pl.BlockSpec((d_in, f0), lambda i: (0, 0)),       # weights/biases stay resident
            pl.BlockSpec((1, f0), lambda i: (0, 0)),
            pl.BlockSpec((f0, f1), lambda i: (0, 0)),
            pl.BlockSpec((1, f1), lambda i: (0, 0)),
            pl.BlockSpec((f1, d_out), lambda i: (0, 0)),
            pl.BlockSpec((1, d_out), lambda i: (0, 0)),
        ],
        out_specs=pl.BlockSpec((tile_b, d_out), lambda i: (i, 0)),
        compiler_params=pltpu.CompilerParams(
            dimension_semantics=("parallel",),
            vmem_limit_bytes=32 * 1024 * 1024,  # footprint is <1 MiB; harmless on all gens
        ),
    )(x, w0_b, b0_f, w1_b, b1_f, w2_b, b2_f)


def xavier_uniform(key, fan_in, fan_out, gain):
    """Matches torch.nn.init.xavier_uniform_ (returns (fan_in, fan_out), i.e. W.T)."""
    bound = gain * math.sqrt(6.0 / (fan_in + fan_out))
    return jax.random.uniform(
        key, (fan_in, fan_out), dtype=jnp.float32, minval=-bound, maxval=bound
    )


def linear_bias(key, fan_in, fan_out):
    """Matches torch Linear's default bias init: U(-1/sqrt(fan_in), 1/sqrt(fan_in))."""
    bound = 1.0 / math.sqrt(fan_in)
    return jax.random.uniform(
        key, (1, fan_out), dtype=jnp.float32, minval=-bound, maxval=bound
    )


def init_params(key, n_input, n_features, n_output):
    k = jax.random.split(key, 6)
    gain_relu = math.sqrt(2.0)   # nn.init.calculate_gain('relu')
    gain_lin = 1.0               # nn.init.calculate_gain('linear')
    w0 = xavier_uniform(k[0], n_input, n_features[0], gain_relu)
    b0 = linear_bias(k[1], n_input, n_features[0])
    w1 = xavier_uniform(k[2], n_features[0], n_features[1], gain_relu)
    b1 = linear_bias(k[3], n_features[0], n_features[1])
    w2 = xavier_uniform(k[4], n_features[1], n_output, gain_lin)
    b2 = linear_bias(k[5], n_features[1], n_output)
    return (w0, b0, w1, b1, w2, b2)


def reference_forward(x, params):
    if x.ndim == 3 and x.shape[1] == 1:
        x = jnp.squeeze(x, axis=1)
    x = x.astype(jnp.float32)
    w0, b0, w1, b1, w2, b2 = params
    h = jnp.maximum(x @ w0 + b0, 0.0)
    h = jnp.maximum(h @ w1 + b1, 0.0)
    return h @ w2 + b2


if __name__ == "__main__":
    key = jax.random.PRNGKey(0)
    k_x, k_x2, k_p = jax.random.split(key, 3)

    # Small shapes consistent with the module: state dim 16, hidden [32, 32], action dim 4.
    n_input = 16
    n_features = (32, 32)
    n_output = 4
    params = init_params(k_p, n_input, n_features, n_output)

    # bf16 MXU operands -> looser tolerance than pure-f32.
    atol = rtol = 2e-2

    # Case 1: small batch with the extra singleton dim that forward() squeezes: (B, 1, D_in).
    batch = 8
    x = jax.random.normal(k_x, (batch, 1, n_input), dtype=jnp.float32)
    out = jax.block_until_ready(actor_forward(x, params))
    ref = reference_forward(x, params)
    assert out.shape == (batch, n_output), out.shape
    assert jnp.allclose(out, ref, atol=atol, rtol=rtol), "mismatch vs reference (B=8)"

    # Case 2: batch not a multiple of the tile (exercises the masked partial-block path).
    batch2 = 37
    x2 = jax.random.normal(k_x2, (batch2, 1, n_input), dtype=jnp.float32)
    out2 = jax.block_until_ready(actor_forward(x2, params))
    ref2 = reference_forward(x2, params)
    assert out2.shape == (batch2, n_output), out2.shape
    assert jnp.allclose(out2, ref2, atol=atol, rtol=rtol), "mismatch vs reference (B=37)"

    print("KERNEL_OK")
</pallas_src>

<mosaic_0001>
module attributes {stable_mosaic.version = 11 : i64} {
  func.func @actor_mlp_kernel(%arg0: i32, %arg1: memref<8x16xf32, #tpu.memory_space<vmem>>, %arg2: memref<16x32xbf16, #tpu.memory_space<vmem>>, %arg3: memref<1x32xf32, #tpu.memory_space<vmem>>, %arg4: memref<32x32xbf16, #tpu.memory_space<vmem>>, %arg5: memref<1x32xf32, #tpu.memory_space<vmem>>, %arg6: memref<32x4xbf16, #tpu.memory_space<vmem>>, %arg7: memref<1x4xf32, #tpu.memory_space<vmem>>, %arg8: memref<8x4xf32, #tpu.memory_space<vmem>>) attributes {dimension_semantics = [#tpu.dimension_semantics<parallel>], iteration_bounds = array<i64: 1>, scalar_prefetch = 0 : i64, scratch_operands = 0 : i64, tpu.core_type = #tpu.core_type<tc>, window_params = [{transform_indices = @transform_0, window_bounds = array<i64: 8, 16>}, {pipeline_mode = #tpu.pipeline_mode<synchronous>, transform_indices = @transform_1, window_bounds = array<i64: 16, 32>}, {pipeline_mode = #tpu.pipeline_mode<synchronous>, transform_indices = @transform_2, window_bounds = array<i64: 1, 32>}, {pipeline_mode = #tpu.pipeline_mode<synchronous>, transform_indices = @transform_3, window_bounds = array<i64: 32, 32>}, {pipeline_mode = #tpu.pipeline_mode<synchronous>, transform_indices = @transform_4, window_bounds = array<i64: 1, 32>}, {pipeline_mode = #tpu.pipeline_mode<synchronous>, transform_indices = @transform_5, window_bounds = array<i64: 32, 4>}, {pipeline_mode = #tpu.pipeline_mode<synchronous>, transform_indices = @transform_6, window_bounds = array<i64: 1, 4>}, {transform_indices = @transform_7, window_bounds = array<i64: 8, 4>}]} {
    %c0 = arith.constant 0 : index
    %c0_0 = arith.constant 0 : index
    %0 = vector.load %arg1[%c0, %c0_0] : memref<8x16xf32, #tpu.memory_space<vmem>>, vector<8x16xf32>
    %1 = arith.truncf %0 : vector<8x16xf32> to vector<8x16xbf16>
    %c0_1 = arith.constant 0 : index
    %c0_2 = arith.constant 0 : index
    %2 = vector.load %arg2[%c0_1, %c0_2] : memref<16x32xbf16, #tpu.memory_space<vmem>>, vector<16x32xbf16>
    %cst = arith.constant dense<0.000000e+00> : vector<8x32xf32>
    %3 = tpu.matmul %1, %2, %cst {dimension_numbers = #tpu.dot_dimension_numbers<[1], [0], [0], [1], [0, 0, 1, 1], [], []>} : vector<8x16xbf16>, vector<16x32xbf16>, vector<8x32xf32> -> vector<8x32xf32>
    %c0_3 = arith.constant 0 : index
    %c0_4 = arith.constant 0 : index
    %4 = vector.load %arg3[%c0_3, %c0_4] : memref<1x32xf32, #tpu.memory_space<vmem>>, vector<1x32xf32>
    %5 = vector.broadcast %4 : vector<1x32xf32> to vector<8x32xf32>
    %6 = arith.addf %3, %5 : vector<8x32xf32>
    %cst_5 = arith.constant 0.000000e+00 : f32
    %7 = vector.broadcast %cst_5 : f32 to vector<8x32xf32>
    %8 = arith.maximumf %6, %7 : vector<8x32xf32>
    %9 = arith.truncf %8 : vector<8x32xf32> to vector<8x32xbf16>
    %c0_6 = arith.constant 0 : index
    %c0_7 = arith.constant 0 : index
    %10 = vector.load %arg4[%c0_6, %c0_7] : memref<32x32xbf16, #tpu.memory_space<vmem>>, vector<32x32xbf16>
    %cst_8 = arith.constant dense<0.000000e+00> : vector<8x32xf32>
    %11 = tpu.matmul %9, %10, %cst_8 {dimension_numbers = #tpu.dot_dimension_numbers<[1], [0], [0], [1], [0, 0, 1, 1], [], []>} : vector<8x32xbf16>, vector<32x32xbf16>, vector<8x32xf32> -> vector<8x32xf32>
    %c0_9 = arith.constant 0 : index
    %c0_10 = arith.constant 0 : index
    %12 = vector.load %arg5[%c0_9, %c0_10] : memref<1x32xf32, #tpu.memory_space<vmem>>, vector<1x32xf32>
    %13 = vector.broadcast %12 : vector<1x32xf32> to vector<8x32xf32>
    %14 = arith.addf %11, %13 : vector<8x32xf32>
    %cst_11 = arith.constant 0.000000e+00 : f32
    %15 = vector.broadcast %cst_11 : f32 to vector<8x32xf32>
    %16 = arith.maximumf %14, %15 : vector<8x32xf32>
    %17 = arith.truncf %16 : vector<8x32xf32> to vector<8x32xbf16>
    %c0_12 = arith.constant 0 : index
    %c0_13 = arith.constant 0 : index
    %18 = vector.load %arg6[%c0_12, %c0_13] : memref<32x4xbf16, #tpu.memory_space<vmem>>, vector<32x4xbf16>
    %cst_14 = arith.constant dense<0.000000e+00> : vector<8x4xf32>
    %19 = tpu.matmul %17, %18, %cst_14 {dimension_numbers = #tpu.dot_dimension_numbers<[1], [0], [0], [1], [0, 0, 1, 1], [], []>} : vector<8x32xbf16>, vector<32x4xbf16>, vector<8x4xf32> -> vector<8x4xf32>
    %c0_15 = arith.constant 0 : index
    %c0_16 = arith.constant 0 : index
    %20 = vector.load %arg7[%c0_15, %c0_16] : memref<1x4xf32, #tpu.memory_space<vmem>>, vector<1x4xf32>
    %21 = vector.broadcast %20 : vector<1x4xf32> to vector<8x4xf32>
    %22 = arith.addf %19, %21 : vector<8x4xf32>
    %c0_17 = arith.constant 0 : index
    %c0_18 = arith.constant 0 : index
    %23 = vector.load %arg8[%c0_17, %c0_18] : memref<8x4xf32, #tpu.memory_space<vmem>>, vector<8x4xf32>
    tpu.vector_store %arg8[%c0_17, %c0_18], %22 {strides = array<i32>} : memref<8x4xf32, #tpu.memory_space<vmem>>, vector<8x4xf32>,
    return
  }
  func.func @transform_0(%arg0: i32) -> (i32, i32) {
    %c0_i32 = arith.constant 0 : i32
    %c0_i32_0 = arith.constant 0 : i32
    return %arg0, %c0_i32 : i32, i32
  }
  func.func @transform_1(%arg0: i32) -> (i32, i32) {
    %c0_i32 = arith.constant 0 : i32
    %c0_i32_0 = arith.constant 0 : i32
    %c0_i32_1 = arith.constant 0 : i32
    return %c0_i32, %c0_i32_0 : i32, i32
  }
  func.func @transform_2(%arg0: i32) -> (i32, i32) {
    %c0_i32 = arith.constant 0 : i32
    %c0_i32_0 = arith.constant 0 : i32
    %c0_i32_1 = arith.constant 0 : i32
    return %c0_i32, %c0_i32_0 : i32, i32
  }
  func.func @transform_3(%arg0: i32) -> (i32, i32) {
    %c0_i32 = arith.constant 0 : i32
    %c0_i32_0 = arith.constant 0 : i32
    %c0_i32_1 = arith.constant 0 : i32
    return %c0_i32, %c0_i32_0 : i32, i32
  }
  func.func @transform_4(%arg0: i32) -> (i32, i32) {
    %c0_i32 = arith.constant 0 : i32
    %c0_i32_0 = arith.constant 0 : i32
    %c0_i32_1 = arith.constant 0 : i32
    return %c0_i32, %c0_i32_0 : i32, i32
  }
  func.func @transform_5(%arg0: i32) -> (i32, i32) {
    %c0_i32 = arith.constant 0 : i32
    %c0_i32_0 = arith.constant 0 : i32
    %c0_i32_1 = arith.constant 0 : i32
    return %c0_i32, %c0_i32_0 : i32, i32
  }
  func.func @transform_6(%arg0: i32) -> (i32, i32) {
    %c0_i32 = arith.constant 0 : i32
    %c0_i32_0 = arith.constant 0 : i32
    %c0_i32_1 = arith.constant 0 : i32
    return %c0_i32, %c0_i32_0 : i32, i32
  }
  func.func @transform_7(%arg0: i32) -> (i32, i32) {
    %c0_i32 = arith.constant 0 : i32
    %c0_i32_0 = arith.constant 0 : i32
    return %arg0, %c0_i32 : i32, i32
  }
}

</mosaic_0001>

<llo_original>
// kernel: tpu_custom_call.1
$region0: #{tpu_custom_call.1}
  #allocation0 [shape = 'u32[]', space=smem, size = 0x4, offset = 0x4, fixed_abs, tag = 'smem constant byte address 0x4 - core index']
  #allocation1 [shape = 'u32[144,128]{1,0:T(1,128)}', space=vmem, size = 0x12000, scoped, tag = 'internal scratch']
  %s0 = inlined_call_operand.hbm [shape: f32[8,16], index: 0, kind: input, shape index: {}]
  %s1 = inlined_call_operand.hbm [shape: bf16[16,32], index: 1, kind: input, shape index: {}]
  %s2 = inlined_call_operand.vmem [shape: f32[1,32], index: 2, kind: input, shape index: {}]
  %s3 = inlined_call_operand.vmem [shape: bf16[32,32], index: 3, kind: input, shape index: {}]
  %s4 = inlined_call_operand.vmem [shape: f32[1,32], index: 4, kind: input, shape index: {}]
  %s5 = inlined_call_operand.vmem [shape: bf16[32,4], index: 5, kind: input, shape index: {}]
  %s6 = inlined_call_operand.vmem [shape: f32[1,4], index: 6, kind: input, shape index: {}]
  %s7 = inlined_call_operand.vmem [shape: f32[8,4], index: 7, kind: output, shape index: {}]
  %s8 = sld [smem:[#allocation0]]
  $region46: #{tpu_custom_call.1} parent=0
    _
  %s10 = ssub.s32 1, %s8
  %s11 = scalar_select 0, %s10, %s8
  $region1: #{tpu_custom_call.1} parent=0
    #allocation2 [shape = 'u8[4096]{0}', space=vmem, size = 0x1000, scoped, tag = 'input window, operand 0, single buffered']
    #allocation3 [shape = 's32[1]{0}', space=sflag, size = 0x4, scoped, tag = 'scoped memory for tpu_custom_call.1']
    #allocation4 [shape = 'u8[4096]{0}', space=vmem, size = 0x1000, scoped, tag = 'input window, operand 1, single buffered']
    #allocation5 [shape = 's32[1]{0}', space=sflag, size = 0x4, scoped, tag = 'scoped memory for tpu_custom_call.1']
    %12 = vsyncpa [#allocation3], 0
    %13 = vsyncpa [#allocation5], 0
    // Predicated region
    $region2: #{tpu_custom_call.1} parent=1 // pred_check
      _
    $region3: #{tpu_custom_call.1} parent=1 // pred_check_branch
      %15 = sbr.rel (0) target = $region5
    $region4: #{tpu_custom_call.1} parent=1 // pred_region
      %s17 = ssub.s32 128, 128
      %18 = vsyncadd [#allocation3], %s17
      %s20 = sshll.u32 [#allocation2], 4
      %s21 = int_to_ptr.vmem [resolvable:$true] %s20
      %23 = dma.hbm_to_vmem [thread:$0]  %s0, 128, %s21, [#allocation3]
    $region5: #{tpu_custom_call.1} parent=1 // pred_fallthru
      _
    // Predicated region
    $region6: #{tpu_custom_call.1} parent=1 // pred_check
      _
    $region7: #{tpu_custom_call.1} parent=1 // pred_check_branch
      %25 = sbr.rel (0) target = $region9
    $region8: #{tpu_custom_call.1} parent=1 // pred_region
      %s27 = ssub.s32 128, 128
      %28 = vsyncadd [#allocation5], %s27
      %s29 = sshll.u32 [#allocation4], 4
      %s30 = int_to_ptr.vmem [resolvable:$true] %s29
      %35 = dma.hbm_to_vmem [thread:$0]  %s1, 128, %s30, [#allocation5], 64, 64, 4
    $region9: #{tpu_custom_call.1} parent=1 // pred_fallthru
      _
    // Predicated region
    $region10: #{tpu_custom_call.1} parent=1 // pred_check
      _
    $region11: #{tpu_custom_call.1} parent=1 // pred_check_branch
      %37 = sbr.rel (0) target = $region13
    $region12: #{tpu_custom_call.1} parent=1 // pred_region
      _
    $region13: #{tpu_custom_call.1} parent=1 // pred_fallthru
      _
    // Predicated region
    $region14: #{tpu_custom_call.1} parent=1 // pred_check
      _
    $region15: #{tpu_custom_call.1} parent=1 // pred_check_branch
      %39 = sbr.rel (0) target = $region17
    $region16: #{tpu_custom_call.1} parent=1 // pred_region
      _
    $region17: #{tpu_custom_call.1} parent=1 // pred_fallthru
      _
    // Predicated region
    $region18: #{tpu_custom_call.1} parent=1 // pred_check
      _
    $region19: #{tpu_custom_call.1} parent=1 // pred_check_branch
      %41 = sbr.rel (0) target = $region21
    $region20: #{tpu_custom_call.1} parent=1 // pred_region
      _
    $region21: #{tpu_custom_call.1} parent=1 // pred_fallthru
      _
    // Predicated region
    $region22: #{tpu_custom_call.1} parent=1 // pred_check
      _
    $region23: #{tpu_custom_call.1} parent=1 // pred_check_branch
      %43 = sbr.rel (0) target = $region25
    $region24: #{tpu_custom_call.1} parent=1 // pred_region
      _
    $region25: #{tpu_custom_call.1} parent=1 // pred_fallthru
      _
    // Predicated region
    $region26: #{tpu_custom_call.1} parent=1 // pred_check
      _
    $region27: #{tpu_custom_call.1} parent=1 // pred_check_branch
      %45 = sbr.rel (0) target = $region29
    $region28: #{tpu_custom_call.1} parent=1 // pred_region
      _
    $region29: #{tpu_custom_call.1} parent=1 // pred_fallthru
      _
    // Predicated region
    $region30: #{tpu_custom_call.1} parent=1 // pred_check
      _
    $region31: #{tpu_custom_call.1} parent=1 // pred_check_branch
      %47 = sbr.rel (0) target = $region33
    $region32: #{tpu_custom_call.1} parent=1 // pred_region
      %48 = dma.done [#allocation3], 128
    $region33: #{tpu_custom_call.1} parent=1 // pred_fallthru
      _
    // Predicated region
    $region34: #{tpu_custom_call.1} parent=1 // pred_check
      _
    $region35: #{tpu_custom_call.1} parent=1 // pred_check_branch
      %50 = sbr.rel (0) target = $region37
    $region36: #{tpu_custom_call.1} parent=1 // pred_region
      %51 = dma.done [#allocation5], 128
    $region37: #{tpu_custom_call.1} parent=1 // pred_fallthru
      _
    %v53 = vld [vmem:[#allocation2] sm:$0xff]
    %v54 = vpack.c.bf16 %v53, %v53
    %v55 = vld [vmem:[#allocation4] sm:$0xf]
    %v56 = vld [vmem:[#allocation4 + $0x4] sm:$0xf]
    %v57 = vld [vmem:[%s2] sm:$0x1]
    %v59 = vlaneseq
    %v60 = vshrl.u32 %v59, 7
    %v61 = vsub.s32 0, %v60
    %v62 = vrot.slane %v57, %v61
    %v66 = vunpack.c.l.b16 %v55
    %v67 = vunpack.c.l.b16 %v56
    %v68 = vpack.c.b16 %v67, %v66
    %vm70 = vcmask 130048
    %v72 = vsel %vm70, %v54, 0
    %74 = vmatprep.subr.bf16.mxu0 0
    %75 = vmatpush1.bf16.msra.mxu0 0
    %76 = vmatprep.subr.bf16.mxu0 0
    %77 = vmatpush1.bf16.msra.mxu0 0
    %78 = vmatprep.subr.bf16.mxu0 0
    %79 = vmatpush1.bf16.msra.mxu0 0
    %80 = vmatprep.subr.bf16.mxu0 0
    %81 = vmatpush1.bf16.msra.mxu0 0
    %82 = vmatprep.subr.bf16.mxu0 0
    %83 = vmatpush1.bf16.msra.mxu0 0
    %84 = vmatprep.subr.bf16.mxu0 0
    %85 = vmatpush1.bf16.msra.mxu0 0
    %86 = vmatprep.subr.bf16.mxu0 0
    %87 = vmatpush1.bf16.msra.mxu0 0
    %88 = vmatprep.subr.bf16.mxu0 0
    %89 = vmatpush1.bf16.msra.mxu0 %v68
    %90 = vmatprep.subr.bf16.mxu0 0
    %91 = vmatpush2.bf16.msra.mxu0 0
    %92 = vmatprep.subr.bf16.mxu0 0
    %93 = vmatpush2.bf16.msra.mxu0 0
    %94 = vmatprep.subr.bf16.mxu0 0
    %95 = vmatpush2.bf16.msra.mxu0 0
    %96 = vmatprep.subr.bf16.mxu0 0
    %97 = vmatpush2.bf16.msra.mxu0 0
    %98 = vmatprep.subr.bf16.mxu0 0
    %99 = vmatpush2.bf16.msra.mxu0 0
    %100 = vmatprep.subr.bf16.mxu0 0
    %101 = vmatpush2.bf16.msra.mxu0 0
    %102 = vmatprep.subr.bf16.mxu0 0
    %103 = vmatpush2.bf16.msra.mxu0 0
    %104 = vmatprep.subr.bf16.mxu0 0
    %105 = vmatpush2.bf16.msra.mxu0 0
    %106 = vmatprep.mubr.bf16.mxu0 0
    %107 = vmatmul.mubr.bf16.gmra.mxu0 %v72
    %v108 = vpop.f32.mrf.mxu0
    %v109 = vadd.f32 %v62, %v108
    %v110 = vpop.f32.mrf.mxu0
    %v111 = vpop.f32.mrf.mxu0
    %v112 = vpop.f32.mrf.mxu0
    %113 = vdwg.mxu0
    %v114 = vmax.f32 %v109, 0.0
    %v115 = vpack.c.bf16 %v114, %v114
    %v116 = vld [vmem:[%s3] sm:$0xf]
    %v117 = vld [vmem:[%s3 + $0x4] sm:$0xf]
    %v118 = vld [vmem:[%s3 + $0x8] sm:$0xf]
    %v119 = vld [vmem:[%s3 + $0xc] sm:$0xf]
    %v120 = vld [vmem:[%s4] sm:$0x1]
    %v122 = vlaneseq
    %v123 = vshrl.u32 %v122, 7
    %v124 = vsub.s32 0, %v123
    %v125 = vrot.slane %v120, %v124
    %v131 = vunpack.c.l.b16 %v116
    %v132 = vunpack.c.l.b16 %v117
    %v133 = vunpack.c.l.b16 %v118
    %v134 = vunpack.c.l.b16 %v119
    %v135 = vpack.c.b16 %v132, %v131
    %v136 = vpack.c.b16 %v134, %v133
    %vm139 = vcmask 261120
    %v141 = vsel %vm139, %v115, 0
    %143 = vmatprep.subr.bf16.mxu0 0
    %144 = vmatpush1.bf16.msra.mxu0 0
    %145 = vmatprep.subr.bf16.mxu0 0
    %146 = vmatpush1.bf16.msra.mxu0 0
    %147 = vmatprep.subr.bf16.mxu0 0
    %148 = vmatpush1.bf16.msra.mxu0 0
    %149 = vmatprep.subr.bf16.mxu0 0
    %150 = vmatpush1.bf16.msra.mxu0 0
    %151 = vmatprep.subr.bf16.mxu0 0
    %152 = vmatpush1.bf16.msra.mxu0 0
    %153 = vmatprep.subr.bf16.mxu0 0
    %154 = vmatpush1.bf16.msra.mxu0 0
    %155 = vmatprep.subr.bf16.mxu0 0
    %156 = vmatpush1.bf16.msra.mxu0 %v136
    %157 = vmatprep.subr.bf16.mxu0 0
    %158 = vmatpush1.bf16.msra.mxu0 %v135
    %159 = vmatprep.subr.bf16.mxu0 0
    %160 = vmatpush2.bf16.msra.mxu0 0
    %161 = vmatprep.subr.bf16.mxu0 0
    %162 = vmatpush2.bf16.msra.mxu0 0
    %163 = vmatprep.subr.bf16.mxu0 0
    %164 = vmatpush2.bf16.msra.mxu0 0
    %165 = vmatprep.subr.bf16.mxu0 0
    %166 = vmatpush2.bf16.msra.mxu0 0
    %167 = vmatprep.subr.bf16.mxu0 0
    %168 = vmatpush2.bf16.msra.mxu0 0
    %169 = vmatprep.subr.bf16.mxu0 0
    %170 = vmatpush2.bf16.msra.mxu0 0
    %171 = vmatprep.subr.bf16.mxu0 0
    %172 = vmatpush2.bf16.msra.mxu0 0
    %173 = vmatprep.subr.bf16.mxu0 0
    %174 = vmatpush2.bf16.msra.mxu0 0
    %175 = vmatprep.mubr.bf16.mxu0 0
    %176 = vmatmul.mubr.bf16.gmra.mxu0 %v141
    %v177 = vpop.f32.mrf.mxu0
    %v178 = vadd.f32 %v125, %v177
    %v179 = vpop.f32.mrf.mxu0
    %v180 = vpop.f32.mrf.mxu0
    %v181 = vpop.f32.mrf.mxu0
    %182 = vdwg.mxu0
    %v183 = vmax.f32 %v178, 0.0
    %v184 = vpack.c.bf16 %v183, %v183
    %v185 = vld [vmem:[%s5] sm:$0xf]
    %v186 = vld [vmem:[%s5 + $0x4] sm:$0xf]
    %v187 = vld [vmem:[%s5 + $0x8] sm:$0xf]
    %v188 = vld [vmem:[%s5 + $0xc] sm:$0xf]
    %v189 = vld [vmem:[%s6] sm:$0x1]
    %v191 = vlaneseq
    %v192 = vshrl.u32 %v191, 7
    %v193 = vsub.s32 0, %v192
    %v194 = vrot.slane %v189, %v193
    %v200 = vunpack.c.l.b16 %v185
    %v201 = vunpack.c.l.b16 %v186
    %v202 = vunpack.c.l.b16 %v187
    %v203 = vunpack.c.l.b16 %v188
    %v204 = vpack.c.b16 %v201, %v200
    %v205 = vpack.c.b16 %v203, %v202
    %v209 = vsel %vm139, %v184, 0
    %211 = vmatprep.subr.bf16.mxu0 0
    %212 = vmatpush1.bf16.msra.mxu0 0
    %213 = vmatprep.subr.bf16.mxu0 0
    %214 = vmatpush1.bf16.msra.mxu0 0
    %215 = vmatprep.subr.bf16.mxu0 0
    %216 = vmatpush1.bf16.msra.mxu0 0
    %217 = vmatprep.subr.bf16.mxu0 0
    %218 = vmatpush1.bf16.msra.mxu0 0
    %219 = vmatprep.subr.bf16.mxu0 0
    %220 = vmatpush1.bf16.msra.mxu0 0
    %221 = vmatprep.subr.bf16.mxu0 0
    %222 = vmatpush1.bf16.msra.mxu0 0
    %223 = vmatprep.subr.bf16.mxu0 0
    %224 = vmatpush1.bf16.msra.mxu0 %v205
    %225 = vmatprep.subr.bf16.mxu0 0
    %226 = vmatpush1.bf16.msra.mxu0 %v204
    %227 = vmatprep.subr.bf16.mxu0 0
    %228 = vmatpush2.bf16.msra.mxu0 0
    %229 = vmatprep.subr.bf16.mxu0 0
    %230 = vmatpush2.bf16.msra.mxu0 0
    %231 = vmatprep.subr.bf16.mxu0 0
    %232 = vmatpush2.bf16.msra.mxu0 0
    %233 = vmatprep.subr.bf16.mxu0 0
    %234 = vmatpush2.bf16.msra.mxu0 0
    %235 = vmatprep.subr.bf16.mxu0 0
    %236 = vmatpush2.bf16.msra.mxu0 0
    %237 = vmatprep.subr.bf16.mxu0 0
    %238 = vmatpush2.bf16.msra.mxu0 0
    %239 = vmatprep.subr.bf16.mxu0 0
    %240 = vmatpush2.bf16.msra.mxu0 0
    %241 = vmatprep.subr.bf16.mxu0 0
    %242 = vmatpush2.bf16.msra.mxu0 0
    %243 = vmatprep.mubr.bf16.mxu0 0
    %244 = vmatmul.mubr.bf16.gmra.mxu0 %v209
    %v245 = vpop.f32.mrf.mxu0
    %v246 = vadd.f32 %v194, %v245
    %v247 = vpop.f32.mrf.mxu0
    %v248 = vpop.f32.mrf.mxu0
    %v249 = vpop.f32.mrf.mxu0
    %250 = vdwg.mxu0
    %vm251 = vcmask 31744
    %252 = vst.msk [vmem:[%s7] sm:$0xff] %vm251, %v246
    // Predicated region
    $region38: #{tpu_custom_call.1} parent=1 // pred_check
      _
    $region39: #{tpu_custom_call.1} parent=1 // pred_check_branch
      %254 = sbr.rel (0) target = $region41
    $region40: #{tpu_custom_call.1} parent=1 // pred_region
      _
    $region41: #{tpu_custom_call.1} parent=1 // pred_fallthru
      _
    // Predicated region
    $region42: #{tpu_custom_call.1} parent=1 // pred_check
      _
    $region43: #{tpu_custom_call.1} parent=1 // pred_check_branch
      %256 = sbr.rel (0) target = $region45
    $region44: #{tpu_custom_call.1} parent=1 // pred_region
      _
    $region45: #{tpu_custom_call.1} parent=1 // pred_fallthru
      _
    %257 = vsyncpa [#allocation3], 1
    %258 = vsyncpa [#allocation5], 1

</llo_original>
